<compile_context>
chip_gen: v7x
topology: tpu7x:2x2x1
jax: 0.10.0
libtpu: 0.0.40
codegen_flags: <defaults>
</compile_context>

<pallas_src>
import functools

import jax
import jax.numpy as jnp
from jax.experimental import pallas as pl
from jax.experimental.pallas import tpu as pltpu


# ----------------------------------------------------------------------------
# Kernels
# ----------------------------------------------------------------------------
def _agg_kernel(*refs, apply_scale):
    """out[i,j] = (scale[i] *) sum_k A[i,k] @ B[k,j]; A is int8 -> bf16 in-kernel."""
    if apply_scale:
        a_ref, b_ref, s_ref, o_ref, acc_ref = refs
    else:
        a_ref, b_ref, o_ref, acc_ref = refs

    k = pl.program_id(2)

    @pl.when(k == 0)
    def _():
        acc_ref[...] = jnp.zeros_like(acc_ref)

    # int8 counts -> bf16 (exact for multiplicities <= 127), then MXU.
    a_bf16 = a_ref[...].astype(jnp.float32).astype(jnp.bfloat16)
    acc_ref[...] += jnp.dot(a_bf16, b_ref[...],
                            preferred_element_type=jnp.float32)

    @pl.when(k == pl.num_programs(2) - 1)
    def _():
        acc = acc_ref[...]
        if apply_scale:
            acc = s_ref[...] * acc          # f32 'mean' normalization at writeback
        o_ref[...] = acc.astype(o_ref.dtype)


def _agg_project_kernel(a_ref, x_ref, wt_ref, b_ref, rs_ref, bs_ref,
                        o_ref, acc_ref):
    """Fused out[i] = rs[i] * ((A @ X)[i] @ W^T) + bs[i] * b.
    W^T stays resident in VMEM (constant-index block); the projection runs only
    in the k==last epilogue, so no Np x F_in intermediate touches HBM."""
    k = pl.program_id(1)

    @pl.when(k == 0)
    def _():
        acc_ref[...] = jnp.zeros_like(acc_ref)

    a_bf16 = a_ref[...].astype(jnp.float32).astype(jnp.bfloat16)
    acc_ref[...] += jnp.dot(a_bf16, x_ref[...],
                            preferred_element_type=jnp.float32)

    @pl.when(k == pl.num_programs(1) - 1)
    def _():
        z = acc_ref[...].astype(jnp.bfloat16)
        h = jnp.dot(z, wt_ref[...], preferred_element_type=jnp.float32)
        o_ref[...] = (rs_ref[...] * h
                      + bs_ref[...] * b_ref[...]).astype(o_ref.dtype)


def _linear_kernel(*refs, scaled):
    """o = x @ W^T + b   (or   rs * (x @ W^T) + bs * b   when scaled)."""
    if scaled:
        x_ref, wt_ref, b_ref, rs_ref, bs_ref, o_ref = refs
    else:
        x_ref, wt_ref, b_ref, o_ref = refs
    h = jnp.dot(x_ref[...], wt_ref[...], preferred_element_type=jnp.float32)
    if scaled:
        o_ref[...] = (rs_ref[...] * h + bs_ref[...] * b_ref[...]).astype(o_ref.dtype)
    else:
        o_ref[...] = (h + b_ref[...]).astype(o_ref.dtype)


# ----------------------------------------------------------------------------
# Tiling / VMEM helpers
# ----------------------------------------------------------------------------
def _round_up(v, m):
    return (v + m - 1) // m * m


def _vmem_budget_bytes():
    """Generation-aware scoped-VMEM budget (~75% of physical VMEM):
    ~96 MiB on v5e/v6e (128 MiB parts), ~48 MiB on v7x (64 MiB part)."""
    try:
        cap = int(pltpu.get_tpu_info().vmem_capacity_bytes)
    except Exception:
        cap = 64 << 20            # conservative (v7x-sized) fallback
    return max((cap * 3) // 4, 32 << 20)


def _tm_candidates(np_):
    """Row-tile candidates, megacore-aware: prefer the largest tm that still
    leaves >= 4 row tiles (keeps both v7x TensorCores load-balanced over the
    'parallel' axis); fall back to any divisor for small graphs."""
    divs = [c for c in (1024, 512, 256, 128) if np_ % c == 0]
    pref = [c for c in divs if np_ // c >= 4]
    return pref if pref else divs


def _tile_plan_agg(np_, f, out_bytes, budget):
    """(tm, tk, tn) for the aggregation matmul, biggest-first under the VMEM
    budget.  Shrink order: tk first (pure pipeline granularity), then tn
    (costs A re-reads), then tm (costs B re-reads — most expensive)."""
    tm_order = _tm_candidates(np_)
    tk_order = [c for c in (2048, 1024, 512, 256, 128) if np_ % c == 0]
    tn_order = []
    for c in (f, 1024, 512, 256, 128):
        if c <= f and f % c == 0 and c not in tn_order:
            tn_order.append(c)
    headroom = 2 << 20
    for tm in tm_order:
        for tn in tn_order:
            for tk in tk_order:
                need = (2 * tm * tk * 1            # int8 A tile (double-buffered)
                        + 2 * tk * tn * 2          # bf16 B tile
                        + 2 * tm * 4               # f32 row scale
                        + 2 * tm * tn * out_bytes  # output tile
                        + tm * tn * 4              # f32 accumulator
                        + headroom)
                if need <= budget:
                    return tm, tk, tn
    return tm_order[-1], tk_order[-1], tn_order[-1]


def _tile_plan_fused(np_, fp_in, fp_out, out_bytes, budget):
    """(tm, tk) for the fused aggregate+project kernel, or None when the
    resident W^T + accumulator cannot fit the VMEM budget (caller falls back)."""
    headroom = 2 << 20
    resident = 2 * fp_in * fp_out * 2 + 2 * fp_out * 4   # bf16 W^T + f32 bias
    tk_order = [c for c in (2048, 1024, 512, 256, 128) if np_ % c == 0]
    for tm in _tm_candidates(np_):
        for tk in tk_order:
            need = (2 * tm * tk * 1
                    + 2 * tk * fp_in * 2
                    + resident
                    + 2 * tm * fp_out * out_bytes
                    + tm * fp_in * 4
                    + 4 * tm * 4
                    + headroom)
            if need <= budget:
                return tm, tk
    return None


# ----------------------------------------------------------------------------
# pallas_call wrappers
# ----------------------------------------------------------------------------
def _agg_matmul(a_i8, b, row_scale, out_dtype, budget):
    """Tiled, pipelined out = (row_scale *) A @ B.  A: (Np,Np) int8, B: (Np,F)."""
    np_ = a_i8.shape[0]
    f = b.shape[1]
    out_bytes = jnp.dtype(out_dtype).itemsize
    tm, tk, tn = _tile_plan_agg(np_, f, out_bytes, budget)
    grid = (np_ // tm, f // tn, np_ // tk)
    n_i, n_j = grid[0], grid[1]

    apply_scale = row_scale is not None
    in_specs = [pl.BlockSpec((tm, tk), lambda i, j, k: (i, k)),
                pl.BlockSpec((tk, tn), lambda i, j, k: (k, j))]
    args = [a_i8, b]
    if apply_scale:
        in_specs.append(pl.BlockSpec((tm, 1), lambda i, j, k: (i, 0)))
        args.append(row_scale)

    cost = pl.CostEstimate(
        flops=2 * np_ * np_ * f,
        transcendentals=0,
        # Real HBM weight: A re-read per column tile, B re-read per row tile.
        bytes_accessed=(np_ * np_ * a_i8.dtype.itemsize * n_j
                        + np_ * f * b.dtype.itemsize * n_i
                        + np_ * f * out_bytes))

    return pl.pallas_call(
        functools.partial(_agg_kernel, apply_scale=apply_scale),
        out_shape=jax.ShapeDtypeStruct((np_, f), out_dtype),
        grid_spec=pltpu.PrefetchScalarGridSpec(
            num_scalar_prefetch=0,
            grid=grid,
            in_specs=in_specs,
            out_specs=pl.BlockSpec((tm, tn), lambda i, j, k: (i, j)),
            scratch_shapes=[pltpu.VMEM((tm, tn), jnp.float32)]),
        compiler_params=pltpu.CompilerParams(
            dimension_semantics=("parallel", "parallel", "arbitrary"),
            vmem_limit_bytes=budget),
        cost_estimate=cost,
    )(*args)


def _agg_project(a_i8, x, wt, b, rs, bs, tm, tk, out_dtype, budget):
    """Fused out = rs * ((A @ X) @ W^T) + bs * b (projection in the epilogue)."""
    np_ = a_i8.shape[0]
    fp_in = x.shape[1]
    fp_out = wt.shape[1]
    out_bytes = jnp.dtype(out_dtype).itemsize
    grid = (np_ // tm, np_ // tk)
    n_i = grid[0]

    cost = pl.CostEstimate(
        flops=2 * np_ * np_ * fp_in + 2 * np_ * fp_in * fp_out,
        transcendentals=0,
        bytes_accessed=(np_ * np_ * 1
                        + np_ * fp_in * 2 * n_i
                        + fp_in * fp_out * 2
                        + np_ * fp_out * out_bytes))

    return pl.pallas_call(
        _agg_project_kernel,
        out_shape=jax.ShapeDtypeStruct((np_, fp_out), out_dtype),
        grid_spec=pltpu.PrefetchScalarGridSpec(
            num_scalar_prefetch=0,
            grid=grid,
            in_specs=[
                pl.BlockSpec((tm, tk), lambda i, k: (i, k)),
                pl.BlockSpec((tk, fp_in), lambda i, k: (k, 0)),
                pl.BlockSpec((fp_in, fp_out), lambda i, k: (0, 0)),  # resident W^T
                pl.BlockSpec((1, fp_out), lambda i, k: (0, 0)),
                pl.BlockSpec((tm, 1), lambda i, k: (i, 0)),
                pl.BlockSpec((tm, 1), lambda i, k: (i, 0)),
            ],
            out_specs=pl.BlockSpec((tm, fp_out), lambda i, k: (i, 0)),
            scratch_shapes=[pltpu.VMEM((tm, fp_in), jnp.float32)]),
        compiler_params=pltpu.CompilerParams(
            dimension_semantics=("parallel", "arbitrary"),
            vmem_limit_bytes=budget),
        cost_estimate=cost,
    )(a_i8, x, wt, b, rs, bs)


def _linear(x, wt, b, rs, bs, out_dtype, budget):
    """Row-tiled o = x @ W^T + b (or rs * (x @ W^T) + bs * b when rs is given)."""
    np_, fp_in = x.shape
    fp_out = wt.shape[1]
    out_bytes = jnp.dtype(out_dtype).itemsize

    tm = None
    for cand in _tm_candidates(np_):
        need = (2 * cand * fp_in * x.dtype.itemsize
                + 2 * fp_in * fp_out * wt.dtype.itemsize
                + 2 * fp_out * 4
                + 2 * cand * fp_out * out_bytes
                + 4 * cand * 4
                + (2 << 20))
        if need <= budget:
            tm = cand
            break
    if tm is None:
        # TODO(synk): K-tile fp_in for layers too wide for a VMEM-resident W^T.
        tm = 128

    grid = (np_ // tm,)
    scaled = rs is not None
    in_specs = [pl.BlockSpec((tm, fp_in), lambda i: (i, 0)),
                pl.BlockSpec((fp_in, fp_out), lambda i: (0, 0)),
                pl.BlockSpec((1, fp_out), lambda i: (0, 0))]
    args = [x, wt, b]
    if scaled:
        in_specs += [pl.BlockSpec((tm, 1), lambda i: (i, 0)),
                     pl.BlockSpec((tm, 1), lambda i: (i, 0))]
        args += [rs, bs]

    return pl.pallas_call(
        functools.partial(_linear_kernel, scaled=scaled),
        out_shape=jax.ShapeDtypeStruct((np_, fp_out), out_dtype),
        grid_spec=pltpu.PrefetchScalarGridSpec(
            num_scalar_prefetch=0,
            grid=grid,
            in_specs=in_specs,
            out_specs=pl.BlockSpec((tm, fp_out), lambda i: (i, 0))),
        compiler_params=pltpu.CompilerParams(
            dimension_semantics=("parallel",),
            vmem_limit_bytes=budget),
    )(*args)


# ----------------------------------------------------------------------------
# Forward
# ----------------------------------------------------------------------------
@functools.partial(jax.jit, static_argnames=("aggregation", "num_nodes"))
def _nasop_forward_impl(x, edge_index, weight, bias, aggregation, num_nodes):
    compute_dtype = jnp.bfloat16
    n, f_in = x.shape
    f_out = weight.shape[0]
    assert n == num_nodes

    np_ = _round_up(max(n, 1), 128)
    fp_in = _round_up(f_in, 128)
    fp_out = _round_up(f_out, 128)
    budget = _vmem_budget_bytes()
    out_bytes = jnp.dtype(x.dtype).itemsize

    # Adjacency: un-normalized int8 counts with self loops, built once at the
    # padded size with a single scatter (no eye-add / cast / pad-copy passes).
    src, dst = edge_index[0], edge_index[1]
    loops = jnp.arange(n, dtype=edge_index.dtype)
    rows = jnp.concatenate([dst, loops])
    cols = jnp.concatenate([src, loops])
    # TODO(synk): per-(dst, src) edge multiplicities > 127 would overflow int8.
    a_i8 = jnp.zeros((np_, np_), jnp.int8).at[rows, cols].add(jnp.int8(1))

    # Degree (self loop included) straight from edge_index — no dense row sum.
    deg = (jnp.bincount(dst, length=n) + 1).astype(jnp.float32)

    x_p = jnp.zeros((np_, fp_in), compute_dtype).at[:n, :f_in].set(
        x.astype(compute_dtype))
    wt_p = jnp.zeros((fp_in, fp_out), compute_dtype).at[:f_in, :f_out].set(
        weight.T.astype(compute_dtype))
    b_p = jnp.zeros((1, fp_out), jnp.float32).at[0, :f_out].set(
        bias.astype(jnp.float32))

    if aggregation == "mean":
        inv_deg_p = jnp.zeros((np_, 1), jnp.float32).at[:n, 0].set(1.0 / deg)
    else:
        inv_deg_p = None

    if f_out <= f_in:
        # out = (1/deg)? * (A @ (X W^T + b)); the N^2 matmul runs with inner F_out.
        h = _linear(x_p, wt_p, b_p, None, None, compute_dtype, budget)
        out_p = _agg_matmul(a_i8, h, inv_deg_p, x.dtype, budget)
    else:
        # out = rs * ((A @ X) W^T) + bs * b; the N^2 matmul runs with inner F_in
        # and the projection is fused into the epilogue (no z HBM round trip).
        if aggregation == "mean":
            rs_p = inv_deg_p
            bs_p = jnp.zeros((np_, 1), jnp.float32).at[:n, 0].set(1.0)
        else:
            rs_p = jnp.ones((np_, 1), jnp.float32)
            bs_p = jnp.zeros((np_, 1), jnp.float32).at[:n, 0].set(deg)
        plan = _tile_plan_fused(np_, fp_in, fp_out, out_bytes, budget)
        if plan is not None:
            tm, tk = plan
            out_p = _agg_project(a_i8, x_p, wt_p, b_p, rs_p, bs_p, tm, tk,
                                 x.dtype, budget)
        else:
            # Very wide features: resident W^T + accumulator exceed the VMEM
            # budget; fall back to the unfused two-kernel path.
            z = _agg_matmul(a_i8, x_p, None, compute_dtype, budget)
            out_p = _linear(z, wt_p, b_p, rs_p, bs_p, x.dtype, budget)

    return out_p[:n, :f_out]


def nasop_forward(x, edge_index, weight, bias, aggregation="add"):
    # TODO(synk): aggregation='max' needs a masked segment-max kernel (not a
    # matmul); 'gcn'/'gat' attention and dropout>0 are out of scope here.
    assert aggregation in ("add", "mean")
    return _nasop_forward_impl(x, edge_index, weight, bias, aggregation,
                               num_nodes=x.shape[0])


# ----------------------------------------------------------------------------
# Demo / self-check
# ----------------------------------------------------------------------------
if __name__ == "__main__":
    key = jax.random.PRNGKey(0)

    N = 8   # nodes
    E = 16  # edges

    # Exercise both matmul orderings (incl. the fused epilogue) and both aggrs.
    configs = [
        (32, 32, "add"),    # F_out <= F_in : linear -> int8-A aggregate
        (48, 16, "mean"),   # F_out <= F_in : 'mean' via f32 epilogue row scale
        (16, 48, "add"),    # F_out >  F_in : fused aggregate+project, deg*b bias
        (16, 48, "mean"),   # F_out >  F_in : fused, 1/deg row scale
    ]

    for idx, (f_in, f_out, aggr) in enumerate(configs):
        k = jax.random.fold_in(key, idx)
        k_x, k_s, k_d, k_w, k_b = jax.random.split(k, 5)

        x = jax.random.normal(k_x, (N, f_in), jnp.float32)
        edge_index = jnp.stack(
            [jax.random.randint(k_s, (E,), 0, N),
             jax.random.randint(k_d, (E,), 0, N)], axis=0)

        bound = 1.0 / (f_in ** 0.5)  # torch.nn.Linear default init range
        weight = jax.random.uniform(k_w, (f_out, f_in), jnp.float32, -bound, bound)
        bias = jax.random.uniform(k_b, (f_out,), jnp.float32, -bound, bound)

        out = nasop_forward(x, edge_index, weight, bias, aggregation=aggr)
        out = jax.block_until_ready(out)

        # Pure-JAX f32 reference of the same semantics.
        a = jnp.zeros((N, N), jnp.float32).at[edge_index[1], edge_index[0]].add(1.0)
        a = a + jnp.eye(N, dtype=jnp.float32)
        ref = a @ (x @ weight.T + bias)
        if aggr == "mean":
            ref = ref / jnp.sum(a, axis=1, keepdims=True)

        assert out.shape == (N, f_out)
        err = float(jnp.max(jnp.abs(out - ref)))
        assert jnp.allclose(out, ref, atol=3e-2, rtol=3e-2), f"max abs err {err}"

    print("KERNEL_OK")
</pallas_src>

<mosaic_0001>
module attributes {stable_mosaic.version = 11 : i64} {
  func.func @_agg_kernel(%arg0: i32, %arg1: i32, %arg2: i32, %arg3: memref<128x128xi8, #tpu.memory_space<vmem>>, %arg4: memref<128x128xbf16, #tpu.memory_space<vmem>>, %arg5: memref<128x128xf32, #tpu.memory_space<vmem>>, %arg6: memref<128x128xf32, #tpu.memory_space<vmem>>) attributes {dimension_semantics = [#tpu.dimension_semantics<parallel>, #tpu.dimension_semantics<parallel>, #tpu.dimension_semantics<arbitrary>], iteration_bounds = array<i64: 1, 1, 1>, scalar_prefetch = 0 : i64, scratch_operands = 1 : i64, tpu.core_type = #tpu.core_type<tc>, window_params = [{transform_indices = @transform_0, window_bounds = array<i64: 128, 128>}, {transform_indices = @transform_1, window_bounds = array<i64: 128, 128>}, {transform_indices = @transform_2, window_bounds = array<i64: 128, 128>}]} {
    %c0_i32 = arith.constant 0 : i32
    %0 = arith.cmpi eq, %arg2, %c0_i32 : i32
    %1 = arith.extui %0 : i1 to i32
    %c0_i32_0 = arith.constant 0 : i32
    %2 = arith.cmpi ne, %1, %c0_i32_0 : i32
    scf.if %2 {
      %cst_10 = arith.constant 0.000000e+00 : f32
      %14 = vector.broadcast %cst_10 : f32 to vector<128x128xf32>
      %c0_11 = arith.constant 0 : index
      %c0_12 = arith.constant 0 : index
      %15 = vector.load %arg6[%c0_11, %c0_12] : memref<128x128xf32, #tpu.memory_space<vmem>>, vector<128x128xf32>
      tpu.vector_store %arg6[%c0_11, %c0_12], %14 {strides = array<i32>} : memref<128x128xf32, #tpu.memory_space<vmem>>, vector<128x128xf32>,
    } else {
    }
    %c0 = arith.constant 0 : index
    %c0_1 = arith.constant 0 : index
    %3 = vector.load %arg3[%c0, %c0_1] : memref<128x128xi8, #tpu.memory_space<vmem>>, vector<128x128xi8>
    %4 = arith.sitofp %3 : vector<128x128xi8> to vector<128x128xf32>
    %5 = arith.truncf %4 : vector<128x128xf32> to vector<128x128xbf16>
    %c0_2 = arith.constant 0 : index
    %c0_3 = arith.constant 0 : index
    %6 = vector.load %arg6[%c0_2, %c0_3] : memref<128x128xf32, #tpu.memory_space<vmem>>, vector<128x128xf32>
    %c0_4 = arith.constant 0 : index
    %c0_5 = arith.constant 0 : index
    %7 = vector.load %arg4[%c0_4, %c0_5] : memref<128x128xbf16, #tpu.memory_space<vmem>>, vector<128x128xbf16>
    %cst = arith.constant dense<0.000000e+00> : vector<128x128xf32>
    %8 = tpu.matmul %5, %7, %cst {dimension_numbers = #tpu.dot_dimension_numbers<[1], [0], [0], [1], [0, 0, 1, 1], [], []>} : vector<128x128xbf16>, vector<128x128xbf16>, vector<128x128xf32> -> vector<128x128xf32>
    %9 = arith.addf %6, %8 : vector<128x128xf32>
    %c0_6 = arith.constant 0 : index
    %c0_7 = arith.constant 0 : index
    %10 = vector.load %arg6[%c0_6, %c0_7] : memref<128x128xf32, #tpu.memory_space<vmem>>, vector<128x128xf32>
    tpu.vector_store %arg6[%c0_6, %c0_7], %9 {strides = array<i32>} : memref<128x128xf32, #tpu.memory_space<vmem>>, vector<128x128xf32>,
    %c0_i32_8 = arith.constant 0 : i32
    %11 = arith.cmpi eq, %arg2, %c0_i32_8 : i32
    %12 = arith.extui %11 : i1 to i32
    %c0_i32_9 = arith.constant 0 : i32
    %13 = arith.cmpi ne, %12, %c0_i32_9 : i32
    scf.if %13 {
      %c0_10 = arith.constant 0 : index
      %c0_11 = arith.constant 0 : index
      %14 = vector.load %arg6[%c0_10, %c0_11] : memref<128x128xf32, #tpu.memory_space<vmem>>, vector<128x128xf32>
      %c0_12 = arith.constant 0 : index
      %c0_13 = arith.constant 0 : index
      %15 = vector.load %arg5[%c0_12, %c0_13] : memref<128x128xf32, #tpu.memory_space<vmem>>, vector<128x128xf32>
      tpu.vector_store %arg5[%c0_12, %c0_13], %14 {strides = array<i32>} : memref<128x128xf32, #tpu.memory_space<vmem>>, vector<128x128xf32>,
    } else {
    }
    return
  }
  func.func @transform_0(%arg0: i32, %arg1: i32, %arg2: i32) -> (i32, i32) {
    %c0_i32 = arith.constant 0 : i32
    return %arg0, %arg2 : i32, i32
  }
  func.func @transform_1(%arg0: i32, %arg1: i32, %arg2: i32) -> (i32, i32) {
    %c0_i32 = arith.constant 0 : i32
    return %arg2, %arg1 : i32, i32
  }
  func.func @transform_2(%arg0: i32, %arg1: i32, %arg2: i32) -> (i32, i32) {
    %c0_i32 = arith.constant 0 : i32
    return %arg0, %arg1 : i32, i32
  }
}

module attributes {stable_mosaic.version = 11 : i64} {
  func.func @_linear_kernel(%arg0: i32, %arg1: memref<128x128xbf16, #tpu.memory_space<vmem>>, %arg2: memref<128x128xbf16, #tpu.memory_space<vmem>>, %arg3: memref<1x128xf32, #tpu.memory_space<vmem>>, %arg4: memref<128x128xbf16, #tpu.memory_space<vmem>>) attributes {dimension_semantics = [#tpu.dimension_semantics<parallel>], iteration_bounds = array<i64: 1>, scalar_prefetch = 0 : i64, scratch_operands = 0 : i64, tpu.core_type = #tpu.core_type<tc>, window_params = [{transform_indices = @transform_0, window_bounds = array<i64: 128, 128>}, {pipeline_mode = #tpu.pipeline_mode<synchronous>, transform_indices = @transform_1, window_bounds = array<i64: 128, 128>}, {pipeline_mode = #tpu.pipeline_mode<synchronous>, transform_indices = @transform_2, window_bounds = array<i64: 1, 128>}, {transform_indices = @transform_3, window_bounds = array<i64: 128, 128>}]} {
    %c0 = arith.constant 0 : index
    %c0_0 = arith.constant 0 : index
    %0 = vector.load %arg1[%c0, %c0_0] : memref<128x128xbf16, #tpu.memory_space<vmem>>, vector<128x128xbf16>
    %c0_1 = arith.constant 0 : index
    %c0_2 = arith.constant 0 : index
    %1 = vector.load %arg2[%c0_1, %c0_2] : memref<128x128xbf16, #tpu.memory_space<vmem>>, vector<128x128xbf16>
    %cst = arith.constant dense<0.000000e+00> : vector<128x128xf32>
    %2 = tpu.matmul %0, %1, %cst {dimension_numbers = #tpu.dot_dimension_numbers<[1], [0], [0], [1], [0, 0, 1, 1], [], []>} : vector<128x128xbf16>, vector<128x128xbf16>, vector<128x128xf32> -> vector<128x128xf32>
    %c0_3 = arith.constant 0 : index
    %c0_4 = arith.constant 0 : index
    %3 = vector.load %arg3[%c0_3, %c0_4] : memref<1x128xf32, #tpu.memory_space<vmem>>, vector<1x128xf32>
    %4 = vector.broadcast %3 : vector<1x128xf32> to vector<128x128xf32>
    %5 = arith.addf %2, %4 : vector<128x128xf32>
    %6 = arith.truncf %5 : vector<128x128xf32> to vector<128x128xbf16>
    %c0_5 = arith.constant 0 : index
    %c0_6 = arith.constant 0 : index
    %7 = vector.load %arg4[%c0_5, %c0_6] : memref<128x128xbf16, #tpu.memory_space<vmem>>, vector<128x128xbf16>
    tpu.vector_store %arg4[%c0_5, %c0_6], %6 {strides = array<i32>} : memref<128x128xbf16, #tpu.memory_space<vmem>>, vector<128x128xbf16>,
    return
  }
  func.func @transform_0(%arg0: i32) -> (i32, i32) {
    %c0_i32 = arith.constant 0 : i32
    %c0_i32_0 = arith.constant 0 : i32
    return %arg0, %c0_i32 : i32, i32
  }
  func.func @transform_1(%arg0: i32) -> (i32, i32) {
    %c0_i32 = arith.constant 0 : i32
    %c0_i32_0 = arith.constant 0 : i32
    %c0_i32_1 = arith.constant 0 : i32
    return %c0_i32, %c0_i32_0 : i32, i32
  }
  func.func @transform_2(%arg0: i32) -> (i32, i32) {
    %c0_i32 = arith.constant 0 : i32
    %c0_i32_0 = arith.constant 0 : i32
    %c0_i32_1 = arith.constant 0 : i32
    return %c0_i32, %c0_i32_0 : i32, i32
  }
  func.func @transform_3(%arg0: i32) -> (i32, i32) {
    %c0_i32 = arith.constant 0 : i32
    %c0_i32_0 = arith.constant 0 : i32
    return %arg0, %c0_i32 : i32, i32
  }
}

</mosaic_0001>

<llo_original>
// kernel: _nasop_forward_impl.2
$region0: #{_nasop_forward_impl.2}
  #allocation0 [shape = 'u32[]', space=smem, size = 0x4, offset = 0x4, fixed_abs, tag = 'smem constant byte address 0x4 - core index']
  #allocation1 [shape = 'u32[144,128]{1,0:T(1,128)}', space=vmem, size = 0x12000, scoped, tag = 'internal scratch']
  %s0 = inlined_call_operand.vmem [shape: bf16[128,128], index: 0, kind: input, shape index: {}]
  %s1 = inlined_call_operand.vmem [shape: bf16[128,128], index: 1, kind: input, shape index: {}]
  %s2 = inlined_call_operand.vmem [shape: f32[1,128], index: 2, kind: input, shape index: {}]
  %s3 = inlined_call_operand.vmem [shape: bf16[128,128], index: 3, kind: output, shape index: {}]
  %s4 = sld [smem:[#allocation0]]
  $region22: #{_nasop_forward_impl.2} parent=0
    _
  %s6 = ssub.s32 1, %s4
  %s7 = scalar_select 0, %s6, %s4
  // Predicated region
  $region2: #{_nasop_forward_impl.2} parent=0 // pred_check
    _
  $region3: #{_nasop_forward_impl.2} parent=0 // pred_check_branch
    %9 = sbr.rel (0) target = $region5
  $region4: #{_nasop_forward_impl.2} parent=0 // pred_region
    _
  $region5: #{_nasop_forward_impl.2} parent=0 // pred_fallthru
    _
  // Predicated region
  $region6: #{_nasop_forward_impl.2} parent=0 // pred_check
    _
  $region7: #{_nasop_forward_impl.2} parent=0 // pred_check_branch
    %11 = sbr.rel (0) target = $region9
  $region8: #{_nasop_forward_impl.2} parent=0 // pred_region
    _
  $region9: #{_nasop_forward_impl.2} parent=0 // pred_fallthru
    _
  // Predicated region
  $region10: #{_nasop_forward_impl.2} parent=0 // pred_check
    _
  $region11: #{_nasop_forward_impl.2} parent=0 // pred_check_branch
    %13 = sbr.rel (0) target = $region13
  $region12: #{_nasop_forward_impl.2} parent=0 // pred_region
    _
  $region13: #{_nasop_forward_impl.2} parent=0 // pred_fallthru
    _
  %v15 = vld [vmem:[%s0] sm:$0xf]
  %v16 = vld [vmem:[%s0 + $0x4] sm:$0xf]
  %v17 = vld [vmem:[%s0 + $0x8] sm:$0xf]
  %v18 = vld [vmem:[%s0 + $0xc] sm:$0xf]
  %v19 = vld [vmem:[%s0 + $0x10] sm:$0xf]
  %v20 = vld [vmem:[%s0 + $0x14] sm:$0xf]
  %v21 = vld [vmem:[%s0 + $0x18] sm:$0xf]
  %v22 = vld [vmem:[%s0 + $0x1c] sm:$0xf]
  %v23 = vld [vmem:[%s0 + $0x20] sm:$0xf]
  %v24 = vld [vmem:[%s0 + $0x24] sm:$0xf]
  %v25 = vld [vmem:[%s0 + $0x28] sm:$0xf]
  %v26 = vld [vmem:[%s0 + $0x2c] sm:$0xf]
  %v27 = vld [vmem:[%s0 + $0x30] sm:$0xf]
  %v28 = vld [vmem:[%s0 + $0x34] sm:$0xf]
  %v29 = vld [vmem:[%s0 + $0x38] sm:$0xf]
  %v30 = vld [vmem:[%s0 + $0x3c] sm:$0xf]
  %v31 = vld [vmem:[%s1] sm:$0xf]
  %v32 = vld [vmem:[%s1 + $0x4] sm:$0xf]
  %v33 = vld [vmem:[%s1 + $0x8] sm:$0xf]
  %v34 = vld [vmem:[%s1 + $0xc] sm:$0xf]
  %v35 = vld [vmem:[%s1 + $0x10] sm:$0xf]
  %v36 = vld [vmem:[%s1 + $0x14] sm:$0xf]
  %v37 = vld [vmem:[%s1 + $0x18] sm:$0xf]
  %v38 = vld [vmem:[%s1 + $0x1c] sm:$0xf]
  %v39 = vld [vmem:[%s1 + $0x20] sm:$0xf]
  %v40 = vld [vmem:[%s1 + $0x24] sm:$0xf]
  %v41 = vld [vmem:[%s1 + $0x28] sm:$0xf]
  %v42 = vld [vmem:[%s1 + $0x2c] sm:$0xf]
  %v43 = vld [vmem:[%s1 + $0x30] sm:$0xf]
  %v44 = vld [vmem:[%s1 + $0x34] sm:$0xf]
  %v45 = vld [vmem:[%s1 + $0x38] sm:$0xf]
  %v46 = vld [vmem:[%s1 + $0x3c] sm:$0xf]
  %v47 = vld [vmem:[%s2] sm:$0x1]
  %v49 = vlaneseq
  %v50 = vshrl.u32 %v49, 7
  %v51 = vsub.s32 0, %v50
  %v52 = vrot.slane %v47, %v51
  %v70 = vunpack.c.l.b16 %v15
  %v71 = vunpack.c.l.b16 %v16
  %v72 = vunpack.c.l.b16 %v17
  %v73 = vunpack.c.l.b16 %v18
  %v74 = vunpack.c.l.b16 %v19
  %v75 = vunpack.c.l.b16 %v20
  %v76 = vunpack.c.l.b16 %v21
  %v77 = vunpack.c.l.b16 %v22
  %v78 = vunpack.c.l.b16 %v23
  %v79 = vunpack.c.l.b16 %v24
  %v80 = vunpack.c.l.b16 %v25
  %v81 = vunpack.c.l.b16 %v26
  %v82 = vunpack.c.l.b16 %v27
  %v83 = vunpack.c.l.b16 %v28
  %v84 = vunpack.c.l.b16 %v29
  %v85 = vunpack.c.l.b16 %v30
  %v86 = vpack.c.b16 %v71, %v70
  %v87 = vpack.c.b16 %v73, %v72
  %v88 = vpack.c.b16 %v75, %v74
  %v89 = vpack.c.b16 %v77, %v76
  %v90 = vpack.c.b16 %v79, %v78
  %v91 = vpack.c.b16 %v81, %v80
  %v92 = vpack.c.b16 %v83, %v82
  %v93 = vpack.c.b16 %v85, %v84
  %v118 = vunpack.c.l.b16 %v31
  %v119 = vunpack.c.l.b16 %v32
  %v120 = vunpack.c.l.b16 %v33
  %v121 = vunpack.c.l.b16 %v34
  %v122 = vunpack.c.l.b16 %v35
  %v123 = vunpack.c.l.b16 %v36
  %v124 = vunpack.c.l.b16 %v37
  %v125 = vunpack.c.l.b16 %v38
  %v126 = vunpack.c.l.b16 %v39
  %v127 = vunpack.c.l.b16 %v40
  %v128 = vunpack.c.l.b16 %v41
  %v129 = vunpack.c.l.b16 %v42
  %v130 = vunpack.c.l.b16 %v43
  %v131 = vunpack.c.l.b16 %v44
  %v132 = vunpack.c.l.b16 %v45
  %v133 = vunpack.c.l.b16 %v46
  %v134 = vpack.c.b16 %v119, %v118
  %v135 = vpack.c.b16 %v121, %v120
  %v136 = vpack.c.b16 %v123, %v122
  %v137 = vpack.c.b16 %v125, %v124
  %v138 = vpack.c.b16 %v127, %v126
  %v139 = vpack.c.b16 %v129, %v128
  %v140 = vpack.c.b16 %v131, %v130
  %v141 = vpack.c.b16 %v133, %v132
  %150 = vmatprep.subr.bf16.mxu0 0
  %151 = vmatpush1.bf16.msra.mxu0 %v134
  %152 = vmatprep.subr.bf16.mxu0 0
  %153 = vmatpush1.bf16.msra.mxu0 %v135
  %154 = vmatprep.subr.bf16.mxu0 0
  %155 = vmatpush1.bf16.msra.mxu0 %v136
  %156 = vmatprep.subr.bf16.mxu0 0
  %157 = vmatpush1.bf16.msra.mxu0 %v137
  %158 = vmatprep.subr.bf16.mxu0 0
  %159 = vmatpush1.bf16.msra.mxu0 %v138
  %160 = vmatprep.subr.bf16.mxu0 0
  %161 = vmatpush1.bf16.msra.mxu0 %v139
  %162 = vmatprep.subr.bf16.mxu0 0
  %163 = vmatpush1.bf16.msra.mxu0 %v140
  %164 = vmatprep.subr.bf16.mxu0 0
  %165 = vmatpush1.bf16.msra.mxu0 %v141
  %166 = vmatprep.subr.bf16.mxu0 0
  %167 = vmatpush1.bf16.msra.mxu0 0
  %168 = vmatprep.subr.bf16.mxu0 0
  %169 = vmatpush1.bf16.msra.mxu0 0
  %170 = vmatprep.subr.bf16.mxu0 0
  %171 = vmatpush1.bf16.msra.mxu0 0
  %172 = vmatprep.subr.bf16.mxu0 0
  %173 = vmatpush1.bf16.msra.mxu0 0
  %174 = vmatprep.subr.bf16.mxu0 0
  %175 = vmatpush1.bf16.msra.mxu0 0
  %176 = vmatprep.subr.bf16.mxu0 0
  %177 = vmatpush1.bf16.msra.mxu0 0
  %178 = vmatprep.subr.bf16.mxu0 0
  %179 = vmatpush1.bf16.msra.mxu0 0
  %180 = vmatprep.subr.bf16.mxu0 0
  %181 = vmatpush1.bf16.msra.mxu0 0
  %182 = vmatprep.mubr.bf16.mxu0 0
  %183 = vmatmul.mubr.bf16.gmra.mrb[0].mxu0 %v86
  %v184 = vpop.f32.mrb[0].mxu0
  %v185 = vadd.f32 %v52, %v184
  %v186 = vpop.f32.mrb[0].mxu0
  %v187 = vpop.f32.mrb[0].mxu0
  %v188 = vadd.f32 %v52, %v187
  %v189 = vpop.f32.mrb[0].mxu0
  %190 = vmatprep.mubr.bf16.mxu0 0
  %191 = vmatmul.mubr.bf16.gmra.mrb[0].mxu0 %v87
  %v192 = vpop.f32.mrb[0].mxu0
  %v193 = vadd.f32 %v52, %v192
  %v194 = vpop.f32.mrb[0].mxu0
  %v195 = vpop.f32.mrb[0].mxu0
  %v196 = vadd.f32 %v52, %v195
  %v197 = vpop.f32.mrb[0].mxu0
  %198 = vmatprep.mubr.bf16.mxu0 0
  %199 = vmatmul.mubr.bf16.gmra.mrb[0].mxu0 %v88
  %v200 = vpop.f32.mrb[0].mxu0
  %v201 = vadd.f32 %v52, %v200
  %v202 = vpop.f32.mrb[0].mxu0
  %v203 = vpop.f32.mrb[0].mxu0
  %v204 = vadd.f32 %v52, %v203
  %v205 = vpop.f32.mrb[0].mxu0
  %206 = vmatprep.mubr.bf16.mxu0 0
  %207 = vmatmul.mubr.bf16.gmra.mrb[0].mxu0 %v89
  %v208 = vpop.f32.mrb[0].mxu0
  %v209 = vadd.f32 %v52, %v208
  %v210 = vpop.f32.mrb[0].mxu0
  %v211 = vpop.f32.mrb[0].mxu0
  %v212 = vadd.f32 %v52, %v211
  %v213 = vpop.f32.mrb[0].mxu0
  %214 = vmatprep.mubr.bf16.mxu0 0
  %215 = vmatmul.mubr.bf16.gmra.mrb[0].mxu0 %v90
  %v216 = vpop.f32.mrb[0].mxu0
  %v217 = vadd.f32 %v52, %v216
  %v218 = vpop.f32.mrb[0].mxu0
  %v219 = vpop.f32.mrb[0].mxu0
  %v220 = vadd.f32 %v52, %v219
  %v221 = vpop.f32.mrb[0].mxu0
  %222 = vmatprep.mubr.bf16.mxu0 0
  %223 = vmatmul.mubr.bf16.gmra.mrb[0].mxu0 %v91
  %v224 = vpop.f32.mrb[0].mxu0
  %v225 = vadd.f32 %v52, %v224
  %v226 = vpop.f32.mrb[0].mxu0
  %v227 = vpop.f32.mrb[0].mxu0
  %v228 = vadd.f32 %v52, %v227
  %v229 = vpop.f32.mrb[0].mxu0
  %230 = vmatprep.mubr.bf16.mxu0 0
  %231 = vmatmul.mubr.bf16.gmra.mrb[0].mxu0 %v92
  %v232 = vpop.f32.mrb[0].mxu0
  %v233 = vadd.f32 %v52, %v232
  %v234 = vpop.f32.mrb[0].mxu0
  %v235 = vpop.f32.mrb[0].mxu0
  %v236 = vadd.f32 %v52, %v235
  %v237 = vpop.f32.mrb[0].mxu0
  %238 = vmatprep.mubr.bf16.mxu0 0
  %239 = vmatmul.mubr.bf16.gmra.mrb[0].mxu0 %v93
  %v240 = vpop.f32.mrb[0].mxu0
  %v241 = vadd.f32 %v52, %v240
  %v242 = vpop.f32.mrb[0].mxu0
  %v243 = vpop.f32.mrb[0].mxu0
  %v244 = vadd.f32 %v52, %v243
  %v245 = vpop.f32.mrb[0].mxu0
  %246 = vdwg.mxu0
  %v247 = vpack.c.bf16 %v188, %v185
  %v248 = vpack.c.bf16 %v196, %v193
  %v249 = vpack.c.bf16 %v204, %v201
  %v250 = vpack.c.bf16 %v212, %v209
  %v251 = vpack.c.bf16 %v220, %v217
  %v252 = vpack.c.bf16 %v228, %v225
  %v253 = vpack.c.bf16 %v236, %v233
  %v254 = vpack.c.bf16 %v244, %v241
  %v263 = vunpack.c.l.b16 %v247
  %v264 = vunpack.c.h.b16 %v247
  %v265 = vunpack.c.l.b16 %v248
  %v266 = vunpack.c.h.b16 %v248
  %v267 = vunpack.c.l.b16 %v249
  %v268 = vunpack.c.h.b16 %v249
  %v269 = vunpack.c.l.b16 %v250
  %v270 = vunpack.c.h.b16 %v250
  %v271 = vunpack.c.l.b16 %v251
  %v272 = vunpack.c.h.b16 %v251
  %v273 = vunpack.c.l.b16 %v252
  %v274 = vunpack.c.h.b16 %v252
  %v275 = vunpack.c.l.b16 %v253
  %v276 = vunpack.c.h.b16 %v253
  %v277 = vunpack.c.l.b16 %v254
  %v278 = vunpack.c.h.b16 %v254
  %v279 = vpack.c.b16 %v263, %v263
  %v280 = vpack.c.b16 %v264, %v264
  %v281 = vpack.c.b16 %v265, %v265
  %v282 = vpack.c.b16 %v266, %v266
  %v283 = vpack.c.b16 %v267, %v267
  %v284 = vpack.c.b16 %v268, %v268
  %v285 = vpack.c.b16 %v269, %v269
  %v286 = vpack.c.b16 %v270, %v270
  %v287 = vpack.c.b16 %v271, %v271
  %v288 = vpack.c.b16 %v272, %v272
  %v289 = vpack.c.b16 %v273, %v273
  %v290 = vpack.c.b16 %v274, %v274
  %v291 = vpack.c.b16 %v275, %v275
  %v292 = vpack.c.b16 %v276, %v276
  %v293 = vpack.c.b16 %v277, %v277
  %v294 = vpack.c.b16 %v278, %v278
  %311 = vst [vmem:[%s3] sm:$0xf] %v279
  %312 = vst [vmem:[%s3 + $0x4] sm:$0xf] %v280
  %313 = vst [vmem:[%s3 + $0x8] sm:$0xf] %v281
  %314 = vst [vmem:[%s3 + $0xc] sm:$0xf] %v282
  %315 = vst [vmem:[%s3 + $0x10] sm:$0xf] %v283
  %316 = vst [vmem:[%s3 + $0x14] sm:$0xf] %v284
  %317 = vst [vmem:[%s3 + $0x18] sm:$0xf] %v285
  %318 = vst [vmem:[%s3 + $0x1c] sm:$0xf] %v286
  %319 = vst [vmem:[%s3 + $0x20] sm:$0xf] %v287
  %320 = vst [vmem:[%s3 + $0x24] sm:$0xf] %v288
  %321 = vst [vmem:[%s3 + $0x28] sm:$0xf] %v289
  %322 = vst [vmem:[%s3 + $0x2c] sm:$0xf] %v290
  %323 = vst [vmem:[%s3 + $0x30] sm:$0xf] %v291
  %324 = vst [vmem:[%s3 + $0x34] sm:$0xf] %v292
  %325 = vst [vmem:[%s3 + $0x38] sm:$0xf] %v293
  %326 = vst [vmem:[%s3 + $0x3c] sm:$0xf] %v294
  // Predicated region
  $region14: #{_nasop_forward_impl.2} parent=0 // pred_check
    _
  $region15: #{_nasop_forward_impl.2} parent=0 // pred_check_branch
    %328 = sbr.rel (0) target = $region17
  $region16: #{_nasop_forward_impl.2} parent=0 // pred_region
    _
  $region17: #{_nasop_forward_impl.2} parent=0 // pred_fallthru
    _
  // Predicated region
  $region18: #{_nasop_forward_impl.2} parent=0 // pred_check
    _
  $region19: #{_nasop_forward_impl.2} parent=0 // pred_check_branch
    %330 = sbr.rel (0) target = $region21
  $region20: #{_nasop_forward_impl.2} parent=0 // pred_region
    _
  $region21: #{_nasop_forward_impl.2} parent=0 // pred_fallthru
    _

// kernel: _nasop_forward_impl.3
$region0: #{_nasop_forward_impl.3}
  #allocation0 [shape = 'u32[]', space=smem, size = 0x4, offset = 0x4, fixed_abs, tag = 'smem constant byte address 0x4 - core index']
  #allocation1 [shape = 'u32[144,128]{1,0:T(1,128)}', space=vmem, size = 0x12000, scoped, tag = 'internal scratch']
  #allocation2 [shape = 'f32[128,128]{1,0:T(8,128)}', space=vmem, size = 0x10000, scoped, tag = 'scratch operand']
  %s0 = inlined_call_operand.vmem [shape: s8[128,128], index: 0, kind: input, shape index: {}]
  %s1 = inlined_call_operand.vmem [shape: bf16[128,128], index: 1, kind: input, shape index: {}]
  %s2 = inlined_call_operand.vmem [shape: f32[128,128], index: 2, kind: output, shape index: {}]
  %s3 = sld [smem:[#allocation0]]
  $region26: #{_nasop_forward_impl.3} parent=0
    _
  %s5 = ssub.s32 1, %s3
  %s6 = scalar_select 0, %s5, %s3
  // Predicated region
  $region2: #{_nasop_forward_impl.3} parent=0 // pred_check
    _
  $region3: #{_nasop_forward_impl.3} parent=0 // pred_check_branch
    %8 = sbr.rel (0) target = $region5
  $region4: #{_nasop_forward_impl.3} parent=0 // pred_region
    _
  $region5: #{_nasop_forward_impl.3} parent=0 // pred_fallthru
    _
  // Predicated region
  $region6: #{_nasop_forward_impl.3} parent=0 // pred_check
    _
  $region7: #{_nasop_forward_impl.3} parent=0 // pred_check_branch
    %10 = sbr.rel (0) target = $region9
  $region8: #{_nasop_forward_impl.3} parent=0 // pred_region
    _
  $region9: #{_nasop_forward_impl.3} parent=0 // pred_fallthru
    _
  %p12 = scmp.eq.s32.totalorder 0, 0
  // Predicated region
  $region10: #{_nasop_forward_impl.3} parent=0 // pred_check
    %p13 = pneg %p12
  $region11: #{_nasop_forward_impl.3} parent=0 // pred_check_branch
    %15 = sbr.rel (%p13) target = $region13
  $region12: #{_nasop_forward_impl.3} parent=0 // pred_region
    %16 = vst [vmem:[#allocation2] sm:$0xff] 0.0
    %17 = vst [vmem:[#allocation2 + $0x8] sm:$0xff] 0.0
    %18 = vst [vmem:[#allocation2 + $0x10] sm:$0xff] 0.0
    %19 = vst [vmem:[#allocation2 + $0x18] sm:$0xff] 0.0
    %20 = vst [vmem:[#allocation2 + $0x20] sm:$0xff] 0.0
    %21 = vst [vmem:[#allocation2 + $0x28] sm:$0xff] 0.0
    %22 = vst [vmem:[#allocation2 + $0x30] sm:$0xff] 0.0
    %23 = vst [vmem:[#allocation2 + $0x38] sm:$0xff] 0.0
    %24 = vst [vmem:[#allocation2 + $0x40] sm:$0xff] 0.0
    %25 = vst [vmem:[#allocation2 + $0x48] sm:$0xff] 0.0
    %26 = vst [vmem:[#allocation2 + $0x50] sm:$0xff] 0.0
    %27 = vst [vmem:[#allocation2 + $0x58] sm:$0xff] 0.0
    %28 = vst [vmem:[#allocation2 + $0x60] sm:$0xff] 0.0
    %29 = vst [vmem:[#allocation2 + $0x68] sm:$0xff] 0.0
    %30 = vst [vmem:[#allocation2 + $0x70] sm:$0xff] 0.0
    %31 = vst [vmem:[#allocation2 + $0x78] sm:$0xff] 0.0
  $region13: #{_nasop_forward_impl.3} parent=0 // pred_fallthru
    _
  %v32 = vld [vmem:[%s0] sm:$0x3]
  %v33 = vld [vmem:[%s0 + $0x2] sm:$0x3]
  %v34 = vld [vmem:[%s0 + $0x4] sm:$0x3]
  %v35 = vld [vmem:[%s0 + $0x6] sm:$0x3]
  %v36 = vld [vmem:[%s0 + $0x8] sm:$0x3]
  %v37 = vld [vmem:[%s0 + $0xa] sm:$0x3]
  %v38 = vld [vmem:[%s0 + $0xc] sm:$0x3]
  %v39 = vld [vmem:[%s0 + $0xe] sm:$0x3]
  %v40 = vld [vmem:[%s0 + $0x10] sm:$0x3]
  %v41 = vld [vmem:[%s0 + $0x12] sm:$0x3]
  %v42 = vld [vmem:[%s0 + $0x14] sm:$0x3]
  %v43 = vld [vmem:[%s0 + $0x16] sm:$0x3]
  %v44 = vld [vmem:[%s0 + $0x18] sm:$0x3]
  %v45 = vld [vmem:[%s0 + $0x1a] sm:$0x3]
  %v46 = vld [vmem:[%s0 + $0x1c] sm:$0x3]
  %v47 = vld [vmem:[%s0 + $0x1e] sm:$0x3]
  %v48 = vunpack.c.l.s8.bf16 %v32
  %v49 = vunpack.c.l.s8.bf16 %v33
  %v50 = vunpack.c.l.s8.bf16 %v34
  %v51 = vunpack.c.l.s8.bf16 %v35
  %v52 = vunpack.c.l.s8.bf16 %v36
  %v53 = vunpack.c.l.s8.bf16 %v37
  %v54 = vunpack.c.l.s8.bf16 %v38
  %v55 = vunpack.c.l.s8.bf16 %v39
  %v56 = vunpack.c.l.s8.bf16 %v40
  %v57 = vunpack.c.l.s8.bf16 %v41
  %v58 = vunpack.c.l.s8.bf16 %v42
  %v59 = vunpack.c.l.s8.bf16 %v43
  %v60 = vunpack.c.l.s8.bf16 %v44
  %v61 = vunpack.c.l.s8.bf16 %v45
  %v62 = vunpack.c.l.s8.bf16 %v46
  %v63 = vunpack.c.l.s8.bf16 %v47
  %v64 = vld [vmem:[#allocation2] sm:$0xff]
  %v65 = vld [vmem:[#allocation2 + $0x8] sm:$0xff]
  %v66 = vld [vmem:[#allocation2 + $0x10] sm:$0xff]
  %v67 = vld [vmem:[#allocation2 + $0x18] sm:$0xff]
  %v68 = vld [vmem:[#allocation2 + $0x20] sm:$0xff]
  %v69 = vld [vmem:[#allocation2 + $0x28] sm:$0xff]
  %v70 = vld [vmem:[#allocation2 + $0x30] sm:$0xff]
  %v71 = vld [vmem:[#allocation2 + $0x38] sm:$0xff]
  %v72 = vld [vmem:[#allocation2 + $0x40] sm:$0xff]
  %v73 = vld [vmem:[#allocation2 + $0x48] sm:$0xff]
  %v74 = vld [vmem:[#allocation2 + $0x50] sm:$0xff]
  %v75 = vld [vmem:[#allocation2 + $0x58] sm:$0xff]
  %v76 = vld [vmem:[#allocation2 + $0x60] sm:$0xff]
  %v77 = vld [vmem:[#allocation2 + $0x68] sm:$0xff]
  %v78 = vld [vmem:[#allocation2 + $0x70] sm:$0xff]
  %v79 = vld [vmem:[#allocation2 + $0x78] sm:$0xff]
  %v80 = vld [vmem:[%s1] sm:$0xf]
  %v81 = vld [vmem:[%s1 + $0x4] sm:$0xf]
  %v82 = vld [vmem:[%s1 + $0x8] sm:$0xf]
  %v83 = vld [vmem:[%s1 + $0xc] sm:$0xf]
  %v84 = vld [vmem:[%s1 + $0x10] sm:$0xf]
  %v85 = vld [vmem:[%s1 + $0x14] sm:$0xf]
  %v86 = vld [vmem:[%s1 + $0x18] sm:$0xf]
  %v87 = vld [vmem:[%s1 + $0x1c] sm:$0xf]
  %v88 = vld [vmem:[%s1 + $0x20] sm:$0xf]
  %v89 = vld [vmem:[%s1 + $0x24] sm:$0xf]
  %v90 = vld [vmem:[%s1 + $0x28] sm:$0xf]
  %v91 = vld [vmem:[%s1 + $0x2c] sm:$0xf]
  %v92 = vld [vmem:[%s1 + $0x30] sm:$0xf]
  %v93 = vld [vmem:[%s1 + $0x34] sm:$0xf]
  %v94 = vld [vmem:[%s1 + $0x38] sm:$0xf]
  %v95 = vld [vmem:[%s1 + $0x3c] sm:$0xf]
  %v112 = vunpack.c.l.b16 %v48
  %v113 = vunpack.c.l.b16 %v49
  %v114 = vunpack.c.l.b16 %v50
  %v115 = vunpack.c.l.b16 %v51
  %v116 = vunpack.c.l.b16 %v52
  %v117 = vunpack.c.l.b16 %v53
  %v118 = vunpack.c.l.b16 %v54
  %v119 = vunpack.c.l.b16 %v55
  %v120 = vunpack.c.l.b16 %v56
  %v121 = vunpack.c.l.b16 %v57
  %v122 = vunpack.c.l.b16 %v58
  %v123 = vunpack.c.l.b16 %v59
  %v124 = vunpack.c.l.b16 %v60
  %v125 = vunpack.c.l.b16 %v61
  %v126 = vunpack.c.l.b16 %v62
  %v127 = vunpack.c.l.b16 %v63
  %v128 = vpack.c.b16 %v113, %v112
  %v129 = vpack.c.b16 %v115, %v114
  %v130 = vpack.c.b16 %v117, %v116
  %v131 = vpack.c.b16 %v119, %v118
  %v132 = vpack.c.b16 %v121, %v120
  %v133 = vpack.c.b16 %v123, %v122
  %v134 = vpack.c.b16 %v125, %v124
  %v135 = vpack.c.b16 %v127, %v126
  %v160 = vunpack.c.l.b16 %v80
  %v161 = vunpack.c.l.b16 %v81
  %v162 = vunpack.c.l.b16 %v82
  %v163 = vunpack.c.l.b16 %v83
  %v164 = vunpack.c.l.b16 %v84
  %v165 = vunpack.c.l.b16 %v85
  %v166 = vunpack.c.l.b16 %v86
  %v167 = vunpack.c.l.b16 %v87
  %v168 = vunpack.c.l.b16 %v88
  %v169 = vunpack.c.l.b16 %v89
  %v170 = vunpack.c.l.b16 %v90
  %v171 = vunpack.c.l.b16 %v91
  %v172 = vunpack.c.l.b16 %v92
  %v173 = vunpack.c.l.b16 %v93
  %v174 = vunpack.c.l.b16 %v94
  %v175 = vunpack.c.l.b16 %v95
  %v176 = vpack.c.b16 %v161, %v160
  %v177 = vpack.c.b16 %v163, %v162
  %v178 = vpack.c.b16 %v165, %v164
  %v179 = vpack.c.b16 %v167, %v166
  %v180 = vpack.c.b16 %v169, %v168
  %v181 = vpack.c.b16 %v171, %v170
  %v182 = vpack.c.b16 %v173, %v172
  %v183 = vpack.c.b16 %v175, %v174
  %192 = vmatprep.subr.bf16.mxu0 0
  %193 = vmatpush1.bf16.msra.mxu0 %v176
  %194 = vmatprep.subr.bf16.mxu0 0
  %195 = vmatpush1.bf16.msra.mxu0 %v177
  %196 = vmatprep.subr.bf16.mxu0 0
  %197 = vmatpush1.bf16.msra.mxu0 %v178
  %198 = vmatprep.subr.bf16.mxu0 0
  %199 = vmatpush1.bf16.msra.mxu0 %v179
  %200 = vmatprep.subr.bf16.mxu0 0
  %201 = vmatpush1.bf16.msra.mxu0 %v180
  %202 = vmatprep.subr.bf16.mxu0 0
  %203 = vmatpush1.bf16.msra.mxu0 %v181
  %204 = vmatprep.subr.bf16.mxu0 0
  %205 = vmatpush1.bf16.msra.mxu0 %v182
  %206 = vmatprep.subr.bf16.mxu0 0
  %207 = vmatpush1.bf16.msra.mxu0 %v183
  %208 = vmatprep.subr.bf16.mxu0 0
  %209 = vmatpush1.bf16.msra.mxu0 0
  %210 = vmatprep.subr.bf16.mxu0 0
  %211 = vmatpush1.bf16.msra.mxu0 0
  %212 = vmatprep.subr.bf16.mxu0 0
  %213 = vmatpush1.bf16.msra.mxu0 0
  %214 = vmatprep.subr.bf16.mxu0 0
  %215 = vmatpush1.bf16.msra.mxu0 0
  %216 = vmatprep.subr.bf16.mxu0 0
  %217 = vmatpush1.bf16.msra.mxu0 0
  %218 = vmatprep.subr.bf16.mxu0 0
  %219 = vmatpush1.bf16.msra.mxu0 0
  %220 = vmatprep.subr.bf16.mxu0 0
  %221 = vmatpush1.bf16.msra.mxu0 0
  %222 = vmatprep.subr.bf16.mxu0 0
  %223 = vmatpush1.bf16.msra.mxu0 0
  %224 = vmatprep.mubr.bf16.mxu0 0
  %225 = vmatmul.mubr.bf16.gmra.mrb[0].mxu0 %v128
  %v226 = vpop.f32.mrb[0].mxu0
  %v227 = vadd.f32 0.0, %v226
  %v228 = vpop.f32.mrb[0].mxu0
  %v229 = vpop.f32.mrb[0].mxu0
  %v230 = vadd.f32 0.0, %v229
  %v231 = vpop.f32.mrb[0].mxu0
  %232 = vmatprep.mubr.bf16.mxu0 0
  %233 = vmatmul.mubr.bf16.gmra.mrb[0].mxu0 %v129
  %v234 = vpop.f32.mrb[0].mxu0
  %v235 = vadd.f32 0.0, %v234
  %v236 = vpop.f32.mrb[0].mxu0
  %v237 = vpop.f32.mrb[0].mxu0
  %v238 = vadd.f32 0.0, %v237
  %v239 = vpop.f32.mrb[0].mxu0
  %240 = vmatprep.mubr.bf16.mxu0 0
  %241 = vmatmul.mubr.bf16.gmra.mrb[0].mxu0 %v130
  %v242 = vpop.f32.mrb[0].mxu0
  %v243 = vadd.f32 0.0, %v242
  %v244 = vpop.f32.mrb[0].mxu0
  %v245 = vpop.f32.mrb[0].mxu0
  %v246 = vadd.f32 0.0, %v245
  %v247 = vpop.f32.mrb[0].mxu0
  %248 = vmatprep.mubr.bf16.mxu0 0
  %249 = vmatmul.mubr.bf16.gmra.mrb[0].mxu0 %v131
  %v250 = vpop.f32.mrb[0].mxu0
  %v251 = vadd.f32 0.0, %v250
  %v252 = vpop.f32.mrb[0].mxu0
  %v253 = vpop.f32.mrb[0].mxu0
  %v254 = vadd.f32 0.0, %v253
  %v255 = vpop.f32.mrb[0].mxu0
  %256 = vmatprep.mubr.bf16.mxu0 0
  %257 = vmatmul.mubr.bf16.gmra.mrb[0].mxu0 %v132
  %v258 = vpop.f32.mrb[0].mxu0
  %v259 = vadd.f32 0.0, %v258
  %v260 = vpop.f32.mrb[0].mxu0
  %v261 = vpop.f32.mrb[0].mxu0
  %v262 = vadd.f32 0.0, %v261
  %v263 = vpop.f32.mrb[0].mxu0
  %264 = vmatprep.mubr.bf16.mxu0 0
  %265 = vmatmul.mubr.bf16.gmra.mrb[0].mxu0 %v133
  %v266 = vpop.f32.mrb[0].mxu0
  %v267 = vadd.f32 0.0, %v266
  %v268 = vpop.f32.mrb[0].mxu0
  %v269 = vpop.f32.mrb[0].mxu0
  %v270 = vadd.f32 0.0, %v269
  %v271 = vpop.f32.mrb[0].mxu0
  %272 = vmatprep.mubr.bf16.mxu0 0
  %273 = vmatmul.mubr.bf16.gmra.mrb[0].mxu0 %v134
  %v274 = vpop.f32.mrb[0].mxu0
  %v275 = vadd.f32 0.0, %v274
  %v276 = vpop.f32.mrb[0].mxu0
  %v277 = vpop.f32.mrb[0].mxu0
  %v278 = vadd.f32 0.0, %v277
  %v279 = vpop.f32.mrb[0].mxu0
  %280 = vmatprep.mubr.bf16.mxu0 0
  %281 = vmatmul.mubr.bf16.gmra.mrb[0].mxu0 %v135
  %v282 = vpop.f32.mrb[0].mxu0
  %v283 = vadd.f32 0.0, %v282
  %v284 = vpop.f32.mrb[0].mxu0
  %v285 = vpop.f32.mrb[0].mxu0
  %v286 = vadd.f32 0.0, %v285
  %v287 = vpop.f32.mrb[0].mxu0
  %288 = vdwg.mxu0
  %v289 = vadd.f32 %v64, %v227
  %v290 = vadd.f32 %v65, %v230
  %v291 = vadd.f32 %v66, %v235
  %v292 = vadd.f32 %v67, %v238
  %v293 = vadd.f32 %v68, %v243
  %v294 = vadd.f32 %v69, %v246
  %v295 = vadd.f32 %v70, %v251
  %v296 = vadd.f32 %v71, %v254
  %v297 = vadd.f32 %v72, %v259
  %v298 = vadd.f32 %v73, %v262
  %v299 = vadd.f32 %v74, %v267
  %v300 = vadd.f32 %v75, %v270
  %v301 = vadd.f32 %v76, %v275
  %v302 = vadd.f32 %v77, %v278
  %v303 = vadd.f32 %v78, %v283
  %v304 = vadd.f32 %v79, %v286
  %305 = vst [vmem:[#allocation2] sm:$0xff] %v289
  %306 = vst [vmem:[#allocation2 + $0x8] sm:$0xff] %v290
  %307 = vst [vmem:[#allocation2 + $0x10] sm:$0xff] %v291
  %308 = vst [vmem:[#allocation2 + $0x18] sm:$0xff] %v292
  %309 = vst [vmem:[#allocation2 + $0x20] sm:$0xff] %v293
  %310 = vst [vmem:[#allocation2 + $0x28] sm:$0xff] %v294
  %311 = vst [vmem:[#allocation2 + $0x30] sm:$0xff] %v295
  %312 = vst [vmem:[#allocation2 + $0x38] sm:$0xff] %v296
  %313 = vst [vmem:[#allocation2 + $0x40] sm:$0xff] %v297
  %314 = vst [vmem:[#allocation2 + $0x48] sm:$0xff] %v298
  %315 = vst [vmem:[#allocation2 + $0x50] sm:$0xff] %v299
  %316 = vst [vmem:[#allocation2 + $0x58] sm:$0xff] %v300
  %317 = vst [vmem:[#allocation2 + $0x60] sm:$0xff] %v301
  %318 = vst [vmem:[#allocation2 + $0x68] sm:$0xff] %v302
  %319 = vst [vmem:[#allocation2 + $0x70] sm:$0xff] %v303
  %320 = vst [vmem:[#allocation2 + $0x78] sm:$0xff] %v304
  // Predicated region
  $region14: #{_nasop_forward_impl.3} parent=0 // pred_check
    %p321 = pneg %p12
  $region15: #{_nasop_forward_impl.3} parent=0 // pred_check_branch
    %323 = sbr.rel (%p321) target = $region17
  $region16: #{_nasop_forward_impl.3} parent=0 // pred_region
    %v324 = vld [vmem:[#allocation2] sm:$0xff]
    %v325 = vld [vmem:[#allocation2 + $0x8] sm:$0xff]
    %v326 = vld [vmem:[#allocation2 + $0x10] sm:$0xff]
    %v327 = vld [vmem:[#allocation2 + $0x18] sm:$0xff]
    %v328 = vld [vmem:[#allocation2 + $0x20] sm:$0xff]
    %v329 = vld [vmem:[#allocation2 + $0x28] sm:$0xff]
    %v330 = vld [vmem:[#allocation2 + $0x30] sm:$0xff]
    %v331 = vld [vmem:[#allocation2 + $0x38] sm:$0xff]
    %v332 = vld [vmem:[#allocation2 + $0x40] sm:$0xff]
    %v333 = vld [vmem:[#allocation2 + $0x48] sm:$0xff]
    %v334 = vld [vmem:[#allocation2 + $0x50] sm:$0xff]
    %v335 = vld [vmem:[#allocation2 + $0x58] sm:$0xff]
    %v336 = vld [vmem:[#allocation2 + $0x60] sm:$0xff]
    %v337 = vld [vmem:[#allocation2 + $0x68] sm:$0xff]
    %v338 = vld [vmem:[#allocation2 + $0x70] sm:$0xff]
    %v339 = vld [vmem:[#allocation2 + $0x78] sm:$0xff]
    %340 = vst [vmem:[%s2] sm:$0xff] %v324
    %341 = vst [vmem:[%s2 + $0x8] sm:$0xff] %v325
    %342 = vst [vmem:[%s2 + $0x10] sm:$0xff] %v326
    %343 = vst [vmem:[%s2 + $0x18] sm:$0xff] %v327
    %344 = vst [vmem:[%s2 + $0x20] sm:$0xff] %v328
    %345 = vst [vmem:[%s2 + $0x28] sm:$0xff] %v329
    %346 = vst [vmem:[%s2 + $0x30] sm:$0xff] %v330
    %347 = vst [vmem:[%s2 + $0x38] sm:$0xff] %v331
    %348 = vst [vmem:[%s2 + $0x40] sm:$0xff] %v332
    %349 = vst [vmem:[%s2 + $0x48] sm:$0xff] %v333
    %350 = vst [vmem:[%s2 + $0x50] sm:$0xff] %v334
    %351 = vst [vmem:[%s2 + $0x58] sm:$0xff] %v335
    %352 = vst [vmem:[%s2 + $0x60] sm:$0xff] %v336
    %353 = vst [vmem:[%s2 + $0x68] sm:$0xff] %v337
    %354 = vst [vmem:[%s2 + $0x70] sm:$0xff] %v338
    %355 = vst [vmem:[%s2 + $0x78] sm:$0xff] %v339
  $region17: #{_nasop_forward_impl.3} parent=0 // pred_fallthru
    _
  // Predicated region
  $region18: #{_nasop_forward_impl.3} parent=0 // pred_check
    _
  $region19: #{_nasop_forward_impl.3} parent=0 // pred_check_branch
    %357 = sbr.rel (0) target = $region21
  $region20: #{_nasop_forward_impl.3} parent=0 // pred_region
    _
  $region21: #{_nasop_forward_impl.3} parent=0 // pred_fallthru
    _
  // Predicated region
  $region22: #{_nasop_forward_impl.3} parent=0 // pred_check
    _
  $region23: #{_nasop_forward_impl.3} parent=0 // pred_check_branch
    %359 = sbr.rel (0) target = $region25
  $region24: #{_nasop_forward_impl.3} parent=0 // pred_region
    _
  $region25: #{_nasop_forward_impl.3} parent=0 // pred_fallthru
    _

</llo_original>
